<compile_context>
chip_gen: v7x
topology: tpu7x:2x2x1
jax: 0.10.0
libtpu: 0.0.40
codegen_flags: <defaults>
</compile_context>

<pallas_src>
import functools

import jax
import jax.numpy as jnp
from jax.experimental import pallas as pl
from jax.experimental.pallas import tpu as pltpu

MiB = 1024 * 1024
# Conservative working-set budget so tiling choices are safe on v7x (64 MiB/TC)
# while still using multi-MB adj tiles on v5e/v6e (128 MiB).
_VMEM_BUDGET = 36 * MiB


def _round_up(n, m):
    return ((n + m - 1) // m) * m


def _pad_to(a, rows, cols):
    r, c = a.shape
    if r == rows and c == cols:
        return a
    return jnp.pad(a, ((0, rows - r), (0, cols - c)))


def _choose_tile(n, preferred):
    """Largest multiple of 128 <= preferred that divides n (n % 128 == 0)."""
    t = max(128, (min(preferred, n) // 128) * 128)
    while n % t != 0:
        t -= 128
    return t


def _plan_tiles(n_nodes, tile_m=512, tile_k=2048):
    """Row tile tm, padded node count (even #row-tiles), contraction tile tk."""
    n128 = _round_up(n_nodes, 128)
    if n128 >= 256:
        tm = max(128, min(tile_m, (n128 // 2 // 128) * 128))
    else:
        tm = 128
    # Even number of row tiles: both TensorCores (v7x) / megacore halves get
    # equal work on the "parallel" axis. A little zero padding on a mem-bound
    # kernel is far cheaper than small tiles or an odd grid.
    n_pad = _round_up(n128, 2 * tm)
    tk = _choose_tile(n_pad, tile_k)
    return n_pad, tm, tk


# ----------------------- projection: p = x @ W^T + b ------------------------

def _proj_kernel_single(x_ref, w_ref, b_ref, o_ref):
    # Whole contraction in one step: no f32 scratch, no predicated init.
    o_ref[...] = (
        jnp.dot(x_ref[...].astype(jnp.bfloat16), w_ref[...],
                preferred_element_type=jnp.float32)
        + b_ref[...]
    ).astype(o_ref.dtype)


def _proj_kernel_ktiled(x_ref, w_ref, b_ref, o_ref, acc_ref):
    k = pl.program_id(1)

    @pl.when(k == 0)
    def _():
        acc_ref[...] = jnp.zeros_like(acc_ref)

    acc_ref[...] += jnp.dot(x_ref[...].astype(jnp.bfloat16), w_ref[...],
                            preferred_element_type=jnp.float32)

    @pl.when(k == pl.num_programs(1) - 1)
    def _():
        o_ref[...] = (acc_ref[...] + b_ref[...]).astype(o_ref.dtype)


def _project(x, w, b, *, tm, tk, out_dtype):
    """p = x @ w + b.  x:(N,Fin) f32/bf16 (cast in-kernel), w:(Fin,Fout) bf16."""
    n, f_in = x.shape
    f_out = w.shape[1]
    grid_k = f_in // tk
    x_isz = jnp.dtype(x.dtype).itemsize
    o_isz = jnp.dtype(out_dtype).itemsize

    needed = (2 * tm * tk * x_isz          # x tiles (double buffered)
              + 2 * tk * f_out * 2         # W tiles
              + 2 * f_out * 4              # bias
              + 2 * tm * f_out * o_isz)    # out tiles
    if grid_k > 1:
        needed += tm * f_out * 4           # f32 accumulator scratch
    vmem_limit = min(int(needed * 1.25) + 4 * MiB, 56 * MiB)

    cost = pl.CostEstimate(
        flops=2 * n * f_in * f_out,
        transcendentals=0,
        bytes_accessed=x_isz * n * f_in + 2 * f_in * f_out + o_isz * n * f_out,
    )

    if grid_k == 1:
        return pl.pallas_call(
            _proj_kernel_single,
            out_shape=jax.ShapeDtypeStruct((n, f_out), out_dtype),
            grid_spec=pltpu.PrefetchScalarGridSpec(
                num_scalar_prefetch=0,
                grid=(n // tm,),
                in_specs=[
                    pl.BlockSpec((tm, tk), lambda i: (i, 0)),
                    pl.BlockSpec((tk, f_out), lambda i: (0, 0)),
                    pl.BlockSpec((1, f_out), lambda i: (0, 0)),
                ],
                out_specs=pl.BlockSpec((tm, f_out), lambda i: (i, 0)),
            ),
            compiler_params=pltpu.CompilerParams(
                dimension_semantics=("parallel",),
                vmem_limit_bytes=vmem_limit,
            ),
            cost_estimate=cost,
        )(x, w, b)

    return pl.pallas_call(
        _proj_kernel_ktiled,
        out_shape=jax.ShapeDtypeStruct((n, f_out), out_dtype),
        grid_spec=pltpu.PrefetchScalarGridSpec(
            num_scalar_prefetch=0,
            grid=(n // tm, grid_k),
            in_specs=[
                pl.BlockSpec((tm, tk), lambda i, k: (i, k)),
                pl.BlockSpec((tk, f_out), lambda i, k: (k, 0)),
                pl.BlockSpec((1, f_out), lambda i, k: (0, 0)),
            ],
            out_specs=pl.BlockSpec((tm, f_out), lambda i, k: (i, 0)),
            scratch_shapes=[pltpu.VMEM((tm, f_out), jnp.float32)],
        ),
        compiler_params=pltpu.CompilerParams(
            dimension_semantics=("parallel", "arbitrary"),
            vmem_limit_bytes=vmem_limit,
        ),
        cost_estimate=cost,
    )(x, w, b)


# ---- aggregation: z = adj @ p, optional ReLU, optional fused next-layer proj ----

def _agg_body(adj_ref, h_ref, o_ref, acc_ref, w_ref, b_ref, *,
              apply_relu, h_resident, tk):
    k = pl.program_id(1)

    @pl.when(k == 0)
    def _():
        acc_ref[...] = jnp.zeros_like(acc_ref)

    if h_resident:
        start = pl.multiple_of(k * tk, tk)
        h_blk = h_ref[pl.ds(start, tk), :]
    else:
        h_blk = h_ref[...]

    acc_ref[...] += jnp.dot(adj_ref[...].astype(jnp.bfloat16), h_blk,
                            preferred_element_type=jnp.float32)

    @pl.when(k == pl.num_programs(1) - 1)
    def _():
        z = acc_ref[...]
        if apply_relu:
            z = jnp.maximum(z, 0.0)
        if w_ref is not None:
            # Fused next-layer projection: tiny (tm x F x F') matmul, hidden
            # under the adj DMA of the mem-bound aggregation.
            z = jnp.dot(z.astype(jnp.bfloat16), w_ref[...],
                        preferred_element_type=jnp.float32) + b_ref[...]
        o_ref[...] = z.astype(o_ref.dtype)


def _agg_kernel(adj_ref, h_ref, o_ref, acc_ref, **kw):
    _agg_body(adj_ref, h_ref, o_ref, acc_ref, None, None, **kw)


def _agg_fused_kernel(adj_ref, h_ref, w_ref, b_ref, o_ref, acc_ref, **kw):
    _agg_body(adj_ref, h_ref, o_ref, acc_ref, w_ref, b_ref, **kw)


def _aggregate(adj, h, *, tm, tk, apply_relu, out_dtype,
               w_next=None, b_next=None):
    n = adj.shape[0]
    f = h.shape[1]
    fused = w_next is not None
    f_next = w_next.shape[1] if fused else f
    adj_isz = jnp.dtype(adj.dtype).itemsize
    o_isz = jnp.dtype(out_dtype).itemsize
    grid_i = n // tm
    grid_k = n // tk

    # Explicit VMEM accounting (double-buffered BlockSpec inputs/outputs).
    fixed = (2 * tm * tk * adj_isz           # adj tiles
             + tm * f * 4                    # f32 accumulator scratch
             + 2 * tm * f_next * o_isz)      # out tiles
    if fused:
        fixed += 2 * f * f_next * 2 + 2 * f_next * 4   # W_next + bias
    h_res_bytes = 2 * n * f * 2
    h_stream_bytes = 2 * tk * f * 2
    h_resident = (fixed + h_res_bytes) <= _VMEM_BUDGET
    h_bytes = h_res_bytes if h_resident else h_stream_bytes
    vmem_limit = min(int((fixed + h_bytes) * 1.25) + 4 * MiB, 56 * MiB)

    if h_resident:
        # Entire h stays in VMEM (constant block index -> fetched once);
        # removes the (N/tm)x re-read of h over HBM.
        h_spec = pl.BlockSpec((n, f), lambda i, k: (0, 0))
        h_traffic = n * f * 2
    else:
        h_spec = pl.BlockSpec((tk, f), lambda i, k: (k, 0))
        h_traffic = grid_i * n * f * 2

    in_specs = [pl.BlockSpec((tm, tk), lambda i, k: (i, k)), h_spec]
    args = [adj, h]
    if fused:
        in_specs += [pl.BlockSpec((f, f_next), lambda i, k: (0, 0)),
                     pl.BlockSpec((1, f_next), lambda i, k: (0, 0))]
        args += [w_next, b_next]
        kernel = functools.partial(_agg_fused_kernel, apply_relu=apply_relu,
                                   h_resident=h_resident, tk=tk)
    else:
        kernel = functools.partial(_agg_kernel, apply_relu=apply_relu,
                                   h_resident=h_resident, tk=tk)

    flops = 2 * n * n * f + (2 * n * f * f_next if fused else 0)
    bytes_accessed = (adj_isz * n * n + h_traffic + o_isz * n * f_next
                      + (2 * f * f_next if fused else 0))

    return pl.pallas_call(
        kernel,
        out_shape=jax.ShapeDtypeStruct((n, f_next), out_dtype),
        grid_spec=pltpu.PrefetchScalarGridSpec(
            num_scalar_prefetch=0,
            grid=(grid_i, grid_k),
            in_specs=in_specs,
            out_specs=pl.BlockSpec((tm, f_next), lambda i, k: (i, 0)),
            scratch_shapes=[pltpu.VMEM((tm, f), jnp.float32)],
        ),
        compiler_params=pltpu.CompilerParams(
            dimension_semantics=("parallel", "arbitrary"),
            vmem_limit_bytes=vmem_limit,
        ),
        cost_estimate=pl.CostEstimate(
            flops=flops, transcendentals=0, bytes_accessed=bytes_accessed),
    )(*args)


# ------------------------------- full forward -------------------------------

def init_params(key, n_feat, n_class, n_hidden, n_layers):
    """Deterministic glorot-uniform init matching the module's layer shapes."""
    params = []
    for i in range(n_layers):
        in_dim = n_feat if i == 0 else n_hidden
        out_dim = n_class if i == n_layers - 1 else n_hidden
        key, wk = jax.random.split(key)
        limit = jnp.sqrt(6.0 / (in_dim + out_dim))
        # PyTorch Linear stores weight as (out, in); keep transposed (in, out).
        w_t = jax.random.uniform(
            wk, (in_dim, out_dim), jnp.float32, minval=-limit, maxval=limit)
        bias = jnp.zeros((out_dim,), jnp.float32)
        params.append((w_t, bias))
    return params


def gnn_encoder_forward(x, adj, params, *, tile_m=512, tile_k=2048):
    """GNNEncoder_OpenGSL.forward (inference mode)."""
    n, f_in = x.shape
    n_layers = len(params)
    n_class = params[-1][0].shape[1]
    n_pad, tm, tk = _plan_tiles(n, tile_m, tile_k)

    # Adjacency: for <=2 aggregations, streaming f32 and casting to bf16
    # in-kernel is cheaper than a standalone N^2 cast pass; for deeper nets
    # the one-time bf16 cast amortizes over the layers.
    adj_pad = _pad_to(adj.astype(jnp.float32), n_pad, n_pad)
    if n_layers >= 3:
        adj_pad = adj_pad.astype(jnp.bfloat16)

    f_in_pad = _round_up(f_in, 128)
    x_pad = _pad_to(x.astype(jnp.float32), n_pad, f_in_pad)

    # Pad/cast all layer weights up front (tiny).
    wp, bp = [], []
    for w_t, b in params:
        fi, fo = w_t.shape
        wp.append(_pad_to(w_t.astype(jnp.float32),
                          _round_up(fi, 128), _round_up(fo, 128)
                          ).astype(jnp.bfloat16))
        bp.append(_pad_to(b.reshape(1, fo).astype(jnp.float32),
                          1, _round_up(fo, 128)))

    # Layer 0 projection: p = x @ W0^T + b0.
    tk_proj = _choose_tile(f_in_pad, 2048)
    p = _project(x_pad, wp[0], bp[0], tm=tm, tk=tk_proj, out_dtype=jnp.bfloat16)

    # Each aggregation fuses ReLU and the next layer's projection into its
    # epilogue -> one pallas_call per layer, no HBM round trip for hidden h.
    for i in range(n_layers):
        last = i == n_layers - 1
        p = _aggregate(
            adj_pad, p, tm=tm, tk=tk,
            apply_relu=not last,
            out_dtype=jnp.float32 if last else jnp.bfloat16,
            w_next=None if last else wp[i + 1],
            b_next=None if last else bp[i + 1],
        )
        # TODO(synk): training-mode dropout (F.dropout, p>0) not implemented;
        #             dropout(training=False) is the identity here.
    return p[:n, :n_class]


def _reference_forward(x, adj, params):
    """Pure-JAX reference following the same bf16-matmul / f32-accum path."""
    adj_b = adj.astype(jnp.bfloat16)
    h = x.astype(jnp.float32)
    n_layers = len(params)
    for i, (w_t, b) in enumerate(params):
        z = jnp.dot(h.astype(jnp.bfloat16), w_t.astype(jnp.bfloat16),
                    preferred_element_type=jnp.float32) + b
        z = jnp.dot(adj_b, z.astype(jnp.bfloat16),
                    preferred_element_type=jnp.float32)
        if i < n_layers - 1:
            z = jnp.maximum(z, 0.0)
        h = z
    return h


if __name__ == "__main__":
    # Small, TPU-friendly shapes; N and n_feat are non-multiples of 128 to
    # exercise the padding paths.
    N = 300
    n_feat = 100
    n_hidden = 64
    n_class = 16

    key = jax.random.PRNGKey(0)
    kx, ka, kp = jax.random.split(key, 3)

    x = jax.random.normal(kx, (N, n_feat), jnp.float32)
    # Symmetric row-normalized dense adjacency (with self loops).
    a = (jax.random.uniform(ka, (N, N)) < 0.05).astype(jnp.float32)
    a = jnp.maximum(a, a.T) + jnp.eye(N, dtype=jnp.float32)
    adj = a / jnp.sum(a, axis=1, keepdims=True)

    ok = True
    for n_layers in (2, 3):   # exercises both adj-cast paths + fused hidden layer
        params = init_params(kp, n_feat, n_class, n_hidden, n_layers)
        out = gnn_encoder_forward(x, adj, params)
        out = jax.block_until_ready(out)
        ref = _reference_forward(x, adj, params)
        ok &= out.shape == (N, n_class)
        ok &= bool(jnp.allclose(out, ref, atol=2e-3, rtol=2e-3))

    assert ok, "mismatch vs reference"
    print("KERNEL_OK")
</pallas_src>

<mosaic_0001>
module attributes {stable_mosaic.version = 11 : i64} {
  func.func @_proj_kernel_single(%arg0: i32, %arg1: memref<128x128xf32, #tpu.memory_space<vmem>>, %arg2: memref<128x128xbf16, #tpu.memory_space<vmem>>, %arg3: memref<1x128xf32, #tpu.memory_space<vmem>>, %arg4: memref<128x128xbf16, #tpu.memory_space<vmem>>) attributes {dimension_semantics = [#tpu.dimension_semantics<parallel>], iteration_bounds = array<i64: 4>, scalar_prefetch = 0 : i64, scratch_operands = 0 : i64, tpu.core_type = #tpu.core_type<tc>, window_params = [{transform_indices = @transform_0, window_bounds = array<i64: 128, 128>}, {pipeline_mode = #tpu.pipeline_mode<synchronous>, transform_indices = @transform_1, window_bounds = array<i64: 128, 128>}, {pipeline_mode = #tpu.pipeline_mode<synchronous>, transform_indices = @transform_2, window_bounds = array<i64: 1, 128>}, {transform_indices = @transform_3, window_bounds = array<i64: 128, 128>}]} {
    %c0 = arith.constant 0 : index
    %c0_0 = arith.constant 0 : index
    %0 = vector.load %arg1[%c0, %c0_0] : memref<128x128xf32, #tpu.memory_space<vmem>>, vector<128x128xf32>
    %1 = arith.truncf %0 : vector<128x128xf32> to vector<128x128xbf16>
    %c0_1 = arith.constant 0 : index
    %c0_2 = arith.constant 0 : index
    %2 = vector.load %arg2[%c0_1, %c0_2] : memref<128x128xbf16, #tpu.memory_space<vmem>>, vector<128x128xbf16>
    %cst = arith.constant dense<0.000000e+00> : vector<128x128xf32>
    %3 = tpu.matmul %1, %2, %cst {dimension_numbers = #tpu.dot_dimension_numbers<[1], [0], [0], [1], [0, 0, 1, 1], [], []>} : vector<128x128xbf16>, vector<128x128xbf16>, vector<128x128xf32> -> vector<128x128xf32>
    %c0_3 = arith.constant 0 : index
    %c0_4 = arith.constant 0 : index
    %4 = vector.load %arg3[%c0_3, %c0_4] : memref<1x128xf32, #tpu.memory_space<vmem>>, vector<1x128xf32>
    %5 = vector.broadcast %4 : vector<1x128xf32> to vector<128x128xf32>
    %6 = arith.addf %3, %5 : vector<128x128xf32>
    %7 = arith.truncf %6 : vector<128x128xf32> to vector<128x128xbf16>
    %c0_5 = arith.constant 0 : index
    %c0_6 = arith.constant 0 : index
    %8 = vector.load %arg4[%c0_5, %c0_6] : memref<128x128xbf16, #tpu.memory_space<vmem>>, vector<128x128xbf16>
    tpu.vector_store %arg4[%c0_5, %c0_6], %7 {strides = array<i32>} : memref<128x128xbf16, #tpu.memory_space<vmem>>, vector<128x128xbf16>,
    return
  }
  func.func @transform_0(%arg0: i32) -> (i32, i32) {
    %c0_i32 = arith.constant 0 : i32
    %c0_i32_0 = arith.constant 0 : i32
    return %arg0, %c0_i32 : i32, i32
  }
  func.func @transform_1(%arg0: i32) -> (i32, i32) {
    %c0_i32 = arith.constant 0 : i32
    %c0_i32_0 = arith.constant 0 : i32
    %c0_i32_1 = arith.constant 0 : i32
    return %c0_i32, %c0_i32_0 : i32, i32
  }
  func.func @transform_2(%arg0: i32) -> (i32, i32) {
    %c0_i32 = arith.constant 0 : i32
    %c0_i32_0 = arith.constant 0 : i32
    %c0_i32_1 = arith.constant 0 : i32
    return %c0_i32, %c0_i32_0 : i32, i32
  }
  func.func @transform_3(%arg0: i32) -> (i32, i32) {
    %c0_i32 = arith.constant 0 : i32
    %c0_i32_0 = arith.constant 0 : i32
    return %arg0, %c0_i32 : i32, i32
  }
}

</mosaic_0001>

<llo_original>
// kernel: tpu_custom_call.1
$region0: #{tpu_custom_call.1}
  #allocation0 [shape = 'u32[]', space=smem, size = 0x4, offset = 0x4, fixed_abs, tag = 'smem constant byte address 0x4 - core index']
  #allocation1 [shape = 'u32[144,128]{1,0:T(1,128)}', space=vmem, size = 0x12000, scoped, tag = 'internal scratch']
  %s0 = inlined_call_operand.hbm [shape: f32[512,128], index: 0, kind: input, shape index: {}]
  %s1 = inlined_call_operand.hbm [shape: bf16[128,128], index: 1, kind: input, shape index: {}]
  %s2 = inlined_call_operand.vmem [shape: f32[1,128], index: 2, kind: input, shape index: {}]
  %s3 = inlined_call_operand.hbm [shape: bf16[512,128], index: 3, kind: output, shape index: {}]
  %s4 = sld [smem:[#allocation0]]
  $region53: #{tpu_custom_call.1} parent=0
    _
  %s6 = ssub.s32 1, %s4
  %s7 = scalar_select 0, %s6, %s4
  $region1: #{tpu_custom_call.1} parent=0
    #allocation2 [shape = 'u8[131072]{0}', space=vmem, size = 0x20000, scoped, tag = 'input window, operand 0']
    #allocation3 [shape = 's32[2]{0}', space=sflag, size = 0x8, scoped, tag = 'scoped memory for tpu_custom_call.1']
    #allocation4 [shape = 's32[2]{0}', space=sflag, size = 0x8, scoped, tag = 'scoped memory for tpu_custom_call.1']
    #allocation5 [shape = 'u8[32768]{0}', space=vmem, size = 0x8000, scoped, tag = 'input window, operand 1, single buffered']
    #allocation6 [shape = 's32[1]{0}', space=sflag, size = 0x4, scoped, tag = 'scoped memory for tpu_custom_call.1']
    #allocation7 [shape = 'u8[65536]{0}', space=vmem, size = 0x10000, scoped, tag = 'output window, operand 0']
    %8 = vsyncpa [#allocation3], 0
    %s9 = scalar_lea.sflag [#allocation3], 1
    %10 = vsyncpa %s9, 0
    %11 = vsyncpa [#allocation6], 0
    %12 = vsyncpa [#allocation4], 0
    %s13 = scalar_lea.sflag [#allocation4], 1
    %14 = vsyncpa %s13, 0
    loop: start=0, step=1, limit=6
    $region2: #{tpu_custom_call.1} parent=1 // loop_pre_header
      _
    $region3: #{tpu_custom_call.1} parent=1 // loop_header
      %s16 = sphi 0, %s20
      %p17 = scmp.ge.s32.totalorder %s16, 6
      %s26 = sphi 0, %s28
      %s29 = sphi 0, %s26
      %s30 = sphi 0, %s29
      %s46 = sphi 0, %s30
      %s50 = sphi 0, %s50
      %s52 = sphi 0, %s50
      %s53 = sphi 0, %s52
      %s67 = sphi 0, %s53
      %s71 = sphi 0, %s71
      %s73 = sphi 0, %s71
      %s74 = sphi 0, %s73
      %s88 = sphi 0, %s74
      %s94 = sphi 0, %s96
      %s97 = sphi 0, %s94
      %s98 = sphi 0, %s97
      %s114 = sphi 0, %s98
    $region4: #{tpu_custom_call.1} parent=1 // loop_header_branch
      %19 = sbr.rel (%p17) target = $region8
    $region5: #{tpu_custom_call.1} parent=1 // loop_body
      %s21 = ssub.s32 %s16, 1
      %s22 = ssub.s32 %s16, 2
      %s23 = sadd.s32 %s16, 1
      %s24 = ssub.s32 %s16, %s23
      %p25 = scmp.eq.s32.totalorder %s24, 0
      %s27 = sadd.s32 %s26, 1
      %s28 = scalar_select %p25, %s26, %s27
      %p31 = pneg %p25
      %p32 = scmp.eq.s32.totalorder %s16, 3
      %p33 = por %p31, %p32
      %p34 = scmp.ne.s32.totalorder %s26, %s29
      %p35 = scmp.eq.s32.totalorder %s16, 0
      %p36 = por %p34, %p35
      %p37 = scmp.ne.s32.totalorder %s26, %s29
      %p38 = scmp.eq.s32.totalorder %s21, 3
      %p39 = por %p37, %p38
      %p40 = scmp.ne.s32.totalorder %s29, %s30
      %p41 = scmp.eq.s32.totalorder %s21, 0
      %p42 = por %p40, %p41
      %p43 = scmp.ne.s32.totalorder %s29, %s30
      %p44 = scmp.eq.s32.totalorder %s22, 3
      %p45 = por %p43, %p44
      %p47 = scmp.ne.s32.totalorder %s30, %s46
      %p48 = scmp.eq.s32.totalorder %s22, 0
      %p49 = por %p47, %p48
      %s51 = sadd.s32 %s50, 1
      %p54 = scmp.eq.s32.totalorder %s16, 3
      %p55 = scmp.ne.s32.totalorder %s50, %s52
      %p56 = scmp.eq.s32.totalorder %s16, 0
      %p57 = por %p55, %p56
      %p58 = scmp.ne.s32.totalorder %s50, %s52
      %p59 = scmp.eq.s32.totalorder %s21, 3
      %p60 = por %p58, %p59
      %p61 = scmp.ne.s32.totalorder %s52, %s53
      %p62 = scmp.eq.s32.totalorder %s21, 0
      %p63 = por %p61, %p62
      %p64 = scmp.ne.s32.totalorder %s52, %s53
      %p65 = scmp.eq.s32.totalorder %s22, 3
      %p66 = por %p64, %p65
      %p68 = scmp.ne.s32.totalorder %s53, %s67
      %p69 = scmp.eq.s32.totalorder %s22, 0
      %p70 = por %p68, %p69
      %s72 = sadd.s32 %s71, 1
      %p75 = scmp.eq.s32.totalorder %s16, 3
      %p76 = scmp.ne.s32.totalorder %s71, %s73
      %p77 = scmp.eq.s32.totalorder %s16, 0
      %p78 = por %p76, %p77
      %p79 = scmp.ne.s32.totalorder %s71, %s73
      %p80 = scmp.eq.s32.totalorder %s21, 3
      %p81 = por %p79, %p80
      %p82 = scmp.ne.s32.totalorder %s73, %s74
      %p83 = scmp.eq.s32.totalorder %s21, 0
      %p84 = por %p82, %p83
      %p85 = scmp.ne.s32.totalorder %s73, %s74
      %p86 = scmp.eq.s32.totalorder %s22, 3
      %p87 = por %p85, %p86
      %p89 = scmp.ne.s32.totalorder %s74, %s88
      %p90 = scmp.eq.s32.totalorder %s22, 0
      %p91 = por %p89, %p90
      %s92 = ssub.s32 %s16, %s23
      %p93 = scmp.eq.s32.totalorder %s92, 0
      %s95 = sadd.s32 %s94, 1
      %s96 = scalar_select %p93, %s94, %s95
      %p99 = pneg %p93
      %p100 = scmp.eq.s32.totalorder %s16, 3
      %p101 = por %p99, %p100
      %p102 = scmp.ne.s32.totalorder %s94, %s97
      %p103 = scmp.eq.s32.totalorder %s16, 0
      %p104 = por %p102, %p103
      %p105 = scmp.ne.s32.totalorder %s94, %s97
      %p106 = scmp.eq.s32.totalorder %s21, 3
      %p107 = por %p105, %p106
      %p108 = scmp.ne.s32.totalorder %s97, %s98
      %p109 = scmp.eq.s32.totalorder %s21, 0
      %p110 = por %p108, %p109
      %p111 = scmp.ne.s32.totalorder %s97, %s98
      %p112 = scmp.eq.s32.totalorder %s22, 3
      %p113 = por %p111, %p112
      %p115 = scmp.ne.s32.totalorder %s98, %s114
      %p116 = scmp.eq.s32.totalorder %s22, 0
      %p117 = por %p115, %p116
      %p118 = scmp.le.s32.totalorder 1, %s16
      %p119 = scmp.lt.s32.totalorder %s16, 5
      %p120 = pnand %p118, %p119
      %p121 = pneg %p120
      // Predicated region
      $region9: #{tpu_custom_call.1} parent=5 // pred_check
        _
      $region10: #{tpu_custom_call.1} parent=5 // pred_check_branch
        %123 = sbr.rel (%p120) target = $region12
      $region11: #{tpu_custom_call.1} parent=5 // pred_region
        %s124 = ssub.s32 %s16, 1
        // Predicated region
        $region13: #{tpu_custom_call.1} parent=11 // pred_check
          %p125 = pneg %p63
        $region14: #{tpu_custom_call.1} parent=11 // pred_check_branch
          %127 = sbr.rel (%p125) target = $region16
        $region15: #{tpu_custom_call.1} parent=11 // pred_region
          %s129 = ssub.s32 1024, 1024
          %130 = vsyncadd [#allocation6], %s129
          %s131 = sshll.u32 [#allocation5], 4
          %s132 = int_to_ptr.vmem [resolvable:$true] %s131
          %137 = dma.hbm_to_vmem [thread:$0]  %s1, 1024, %s132, [#allocation6], 64, 64, 4
        $region16: #{tpu_custom_call.1} parent=11 // pred_fallthru
          _
        // Predicated region
        $region17: #{tpu_custom_call.1} parent=11 // pred_check
          %p138 = pneg %p84
        $region18: #{tpu_custom_call.1} parent=11 // pred_check_branch
          %140 = sbr.rel (%p138) target = $region20
        $region19: #{tpu_custom_call.1} parent=11 // pred_region
          _
        $region20: #{tpu_custom_call.1} parent=11 // pred_fallthru
          _
      $region12: #{tpu_custom_call.1} parent=5 // pred_fallthru
        _
      %p141 = scmp.lt.s32.totalorder %s16, 4
      // Predicated region
      $region21: #{tpu_custom_call.1} parent=5 // pred_check
        %p142 = pneg %p141
      $region22: #{tpu_custom_call.1} parent=5 // pred_check_branch
        %144 = sbr.rel (%p142) target = $region24
      $region23: #{tpu_custom_call.1} parent=5 // pred_region
        // Predicated region
        $region25: #{tpu_custom_call.1} parent=23 // pred_check
          %p145 = pneg %p36
        $region26: #{tpu_custom_call.1} parent=23 // pred_check_branch
          %147 = sbr.rel (%p145) target = $region28
        $region27: #{tpu_custom_call.1} parent=23 // pred_region
          %s148 = sand.u32 %s26, 1
          %s149 = scalar_lea.sflag [#allocation3], %s148
          %s150 = sand.u32 %s26, 1
          %s151 = smul.addr %s150, 128
          %s152 = scalar_lea.vmem [#allocation2], %s151
          %s153 = smul.u32 16, %s16
          %s155 = ssub.s32 2048, 2048
          %156 = vsyncadd %s149, %s155
          %s157 = smul.addr %s153, 128
          %s158 = scalar_lea.hbm %s0, %s157
          %s159 = sshll.u32 %s152, 4
          %s160 = int_to_ptr.vmem [resolvable:$true] %s159
          %165 = dma.hbm_to_vmem [thread:$0]  %s158, 2048, %s160, %s149, 128, 128, 8
        $region28: #{tpu_custom_call.1} parent=23 // pred_fallthru
          _
      $region24: #{tpu_custom_call.1} parent=5 // pred_fallthru
        _
      %p166 = scmp.le.s32.totalorder 1, %s16
      %p167 = scmp.lt.s32.totalorder %s16, 5
      %p168 = pnand %p166, %p167
      %p169 = pneg %p168
      // Predicated region
      $region29: #{tpu_custom_call.1} parent=5 // pred_check
        _
      $region30: #{tpu_custom_call.1} parent=5 // pred_check_branch
        %171 = sbr.rel (%p168) target = $region32
      $region31: #{tpu_custom_call.1} parent=5 // pred_region
        %s172 = ssub.s32 %s16, 1
        %s173 = sand.u32 %s29, 1
        %s174 = scalar_lea.sflag [#allocation3], %s173
        %s175 = sand.u32 %s29, 1
        %s176 = smul.addr %s175, 128
        %s177 = scalar_lea.vmem [#allocation2], %s176
        // Predicated region
        $region33: #{tpu_custom_call.1} parent=31 // pred_check
          %p178 = pneg %p42
        $region34: #{tpu_custom_call.1} parent=31 // pred_check_branch
          %180 = sbr.rel (%p178) target = $region36
        $region35: #{tpu_custom_call.1} parent=31 // pred_region
          %181 = dma.done %s174, 2048
        $region36: #{tpu_custom_call.1} parent=31 // pred_fallthru
          _
        // Predicated region
        $region37: #{tpu_custom_call.1} parent=31 // pred_check
          %p182 = pneg %p63
        $region38: #{tpu_custom_call.1} parent=31 // pred_check_branch
          %184 = sbr.rel (%p182) target = $region40
        $region39: #{tpu_custom_call.1} parent=31 // pred_region
          %185 = dma.done [#allocation6], 1024
        $region40: #{tpu_custom_call.1} parent=31 // pred_fallthru
          _
        %s186 = sand.u32 %s29, 1
        %s187 = scalar_lea.sflag [#allocation3], %s186
        %s188 = sand.u32 %s29, 1
        %s189 = smul.addr %s188, 128
        %s190 = scalar_lea.vmem [#allocation2], %s189
        %p191 = pneg %p42
        %p192 = pneg %p39
        %p193 = pneg %p63
        %p194 = pneg %p60
        %p195 = pneg %p84
        %p196 = pneg %p81
        %p197 = pneg %p110
        %p198 = pneg %p107
        %s199 = sand.u32 %s97, 1
        %s200 = scalar_lea.sflag [#allocation4], %s199
        %s201 = sand.u32 %s97, 1
        %s202 = smul.addr %s201, 64
        %s203 = scalar_lea.vmem [#allocation7], %s202
        %s204 = smul.u32 16, %s21
        %s205 = smul.u32 16, %s21
        %v207 = vld [vmem:[%s177] sm:$0xff]
        %v208 = vld [vmem:[%s177 + $0x8] sm:$0xff]
        %v209 = vld [vmem:[%s177 + $0x10] sm:$0xff]
        %v210 = vld [vmem:[%s177 + $0x18] sm:$0xff]
        %v211 = vld [vmem:[%s177 + $0x20] sm:$0xff]
        %v212 = vld [vmem:[%s177 + $0x28] sm:$0xff]
        %v213 = vld [vmem:[%s177 + $0x30] sm:$0xff]
        %v214 = vld [vmem:[%s177 + $0x38] sm:$0xff]
        %v215 = vld [vmem:[%s177 + $0x40] sm:$0xff]
        %v216 = vld [vmem:[%s177 + $0x48] sm:$0xff]
        %v217 = vld [vmem:[%s177 + $0x50] sm:$0xff]
        %v218 = vld [vmem:[%s177 + $0x58] sm:$0xff]
        %v219 = vld [vmem:[%s177 + $0x60] sm:$0xff]
        %v220 = vld [vmem:[%s177 + $0x68] sm:$0xff]
        %v221 = vld [vmem:[%s177 + $0x70] sm:$0xff]
        %v222 = vld [vmem:[%s177 + $0x78] sm:$0xff]
        %v223 = vpack.c.bf16 %v208, %v207
        %v224 = vpack.c.bf16 %v210, %v209
        %v225 = vpack.c.bf16 %v212, %v211
        %v226 = vpack.c.bf16 %v214, %v213
        %v227 = vpack.c.bf16 %v216, %v215
        %v228 = vpack.c.bf16 %v218, %v217
        %v229 = vpack.c.bf16 %v220, %v219
        %v230 = vpack.c.bf16 %v222, %v221
        %v231 = vld [vmem:[#allocation5] sm:$0xf]
        %v232 = vld [vmem:[#allocation5 + $0x4] sm:$0xf]
        %v233 = vld [vmem:[#allocation5 + $0x8] sm:$0xf]
        %v234 = vld [vmem:[#allocation5 + $0xc] sm:$0xf]
        %v235 = vld [vmem:[#allocation5 + $0x10] sm:$0xf]
        %v236 = vld [vmem:[#allocation5 + $0x14] sm:$0xf]
        %v237 = vld [vmem:[#allocation5 + $0x18] sm:$0xf]
        %v238 = vld [vmem:[#allocation5 + $0x1c] sm:$0xf]
        %v239 = vld [vmem:[#allocation5 + $0x20] sm:$0xf]
        %v240 = vld [vmem:[#allocation5 + $0x24] sm:$0xf]
        %v241 = vld [vmem:[#allocation5 + $0x28] sm:$0xf]
        %v242 = vld [vmem:[#allocation5 + $0x2c] sm:$0xf]
        %v243 = vld [vmem:[#allocation5 + $0x30] sm:$0xf]
        %v244 = vld [vmem:[#allocation5 + $0x34] sm:$0xf]
        %v245 = vld [vmem:[#allocation5 + $0x38] sm:$0xf]
        %v246 = vld [vmem:[#allocation5 + $0x3c] sm:$0xf]
        %v247 = vld [vmem:[%s2] sm:$0x1]
        %v249 = vlaneseq
        %v250 = vshrl.u32 %v249, 7
        %v251 = vsub.s32 0, %v250
        %v252 = vrot.slane %v247, %v251
        %v270 = vunpack.c.l.b16 %v231
        %v271 = vunpack.c.l.b16 %v232
        %v272 = vunpack.c.l.b16 %v233
        %v273 = vunpack.c.l.b16 %v234
        %v274 = vunpack.c.l.b16 %v235
        %v275 = vunpack.c.l.b16 %v236
        %v276 = vunpack.c.l.b16 %v237
        %v277 = vunpack.c.l.b16 %v238
        %v278 = vunpack.c.l.b16 %v239
        %v279 = vunpack.c.l.b16 %v240
        %v280 = vunpack.c.l.b16 %v241
        %v281 = vunpack.c.l.b16 %v242
        %v282 = vunpack.c.l.b16 %v243
        %v283 = vunpack.c.l.b16 %v244
        %v284 = vunpack.c.l.b16 %v245
        %v285 = vunpack.c.l.b16 %v246
        %v286 = vpack.c.b16 %v271, %v270
        %v287 = vpack.c.b16 %v273, %v272
        %v288 = vpack.c.b16 %v275, %v274
        %v289 = vpack.c.b16 %v277, %v276
        %v290 = vpack.c.b16 %v279, %v278
        %v291 = vpack.c.b16 %v281, %v280
        %v292 = vpack.c.b16 %v283, %v282
        %v293 = vpack.c.b16 %v285, %v284
        %302 = vmatprep.subr.bf16.mxu0 0
        %303 = vmatpush1.bf16.msra.mxu0 %v286
        %304 = vmatprep.subr.bf16.mxu0 0
        %305 = vmatpush1.bf16.msra.mxu0 %v287
        %306 = vmatprep.subr.bf16.mxu0 0
        %307 = vmatpush1.bf16.msra.mxu0 %v288
        %308 = vmatprep.subr.bf16.mxu0 0
        %309 = vmatpush1.bf16.msra.mxu0 %v289
        %310 = vmatprep.subr.bf16.mxu0 0
        %311 = vmatpush1.bf16.msra.mxu0 %v290
        %312 = vmatprep.subr.bf16.mxu0 0
        %313 = vmatpush1.bf16.msra.mxu0 %v291
        %314 = vmatprep.subr.bf16.mxu0 0
        %315 = vmatpush1.bf16.msra.mxu0 %v292
        %316 = vmatprep.subr.bf16.mxu0 0
        %317 = vmatpush1.bf16.msra.mxu0 %v293
        %318 = vmatprep.subr.bf16.mxu0 0
        %319 = vmatpush1.bf16.msra.mxu0 0
        %320 = vmatprep.subr.bf16.mxu0 0
        %321 = vmatpush1.bf16.msra.mxu0 0
        %322 = vmatprep.subr.bf16.mxu0 0
        %323 = vmatpush1.bf16.msra.mxu0 0
        %324 = vmatprep.subr.bf16.mxu0 0
        %325 = vmatpush1.bf16.msra.mxu0 0
        %326 = vmatprep.subr.bf16.mxu0 0
        %327 = vmatpush1.bf16.msra.mxu0 0
        %328 = vmatprep.subr.bf16.mxu0 0
        %329 = vmatpush1.bf16.msra.mxu0 0
        %330 = vmatprep.subr.bf16.mxu0 0
        %331 = vmatpush1.bf16.msra.mxu0 0
        %332 = vmatprep.subr.bf16.mxu0 0
        %333 = vmatpush1.bf16.msra.mxu0 0
        %334 = vmatprep.mubr.bf16.mxu0 0
        %335 = vmatmul.mubr.bf16.gmra.mrb[0].mxu0 %v223
        %v336 = vpop.f32.mrb[0].mxu0
        %v337 = vadd.f32 %v252, %v336
        %v338 = vpop.f32.mrb[0].mxu0
        %v339 = vpop.f32.mrb[0].mxu0
        %v340 = vadd.f32 %v252, %v339
        %v341 = vpop.f32.mrb[0].mxu0
        %342 = vmatprep.mubr.bf16.mxu0 0
        %343 = vmatmul.mubr.bf16.gmra.mrb[0].mxu0 %v224
        %v344 = vpop.f32.mrb[0].mxu0
        %v345 = vadd.f32 %v252, %v344
        %v346 = vpop.f32.mrb[0].mxu0
        %v347 = vpop.f32.mrb[0].mxu0
        %v348 = vadd.f32 %v252, %v347
        %v349 = vpop.f32.mrb[0].mxu0
        %350 = vmatprep.mubr.bf16.mxu0 0
        %351 = vmatmul.mubr.bf16.gmra.mrb[0].mxu0 %v225
        %v352 = vpop.f32.mrb[0].mxu0
        %v353 = vadd.f32 %v252, %v352
        %v354 = vpop.f32.mrb[0].mxu0
        %v355 = vpop.f32.mrb[0].mxu0
        %v356 = vadd.f32 %v252, %v355
        %v357 = vpop.f32.mrb[0].mxu0
        %358 = vmatprep.mubr.bf16.mxu0 0
        %359 = vmatmul.mubr.bf16.gmra.mrb[0].mxu0 %v226
        %v360 = vpop.f32.mrb[0].mxu0
        %v361 = vadd.f32 %v252, %v360
        %v362 = vpop.f32.mrb[0].mxu0
        %v363 = vpop.f32.mrb[0].mxu0
        %v364 = vadd.f32 %v252, %v363
        %v365 = vpop.f32.mrb[0].mxu0
        %366 = vmatprep.mubr.bf16.mxu0 0
        %367 = vmatmul.mubr.bf16.gmra.mrb[0].mxu0 %v227
        %v368 = vpop.f32.mrb[0].mxu0
        %v369 = vadd.f32 %v252, %v368
        %v370 = vpop.f32.mrb[0].mxu0
        %v371 = vpop.f32.mrb[0].mxu0
        %v372 = vadd.f32 %v252, %v371
        %v373 = vpop.f32.mrb[0].mxu0
        %374 = vmatprep.mubr.bf16.mxu0 0
        %375 = vmatmul.mubr.bf16.gmra.mrb[0].mxu0 %v228
        %v376 = vpop.f32.mrb[0].mxu0
        %v377 = vadd.f32 %v252, %v376
        %v378 = vpop.f32.mrb[0].mxu0
        %v379 = vpop.f32.mrb[0].mxu0
        %v380 = vadd.f32 %v252, %v379
        %v381 = vpop.f32.mrb[0].mxu0
        %382 = vmatprep.mubr.bf16.mxu0 0
        %383 = vmatmul.mubr.bf16.gmra.mrb[0].mxu0 %v229
        %v384 = vpop.f32.mrb[0].mxu0
        %v385 = vadd.f32 %v252, %v384
        %v386 = vpop.f32.mrb[0].mxu0
        %v387 = vpop.f32.mrb[0].mxu0
        %v388 = vadd.f32 %v252, %v387
        %v389 = vpop.f32.mrb[0].mxu0
        %390 = vmatprep.mubr.bf16.mxu0 0
        %391 = vmatmul.mubr.bf16.gmra.mrb[0].mxu0 %v230
        %v392 = vpop.f32.mrb[0].mxu0
        %v393 = vadd.f32 %v252, %v392
        %v394 = vpop.f32.mrb[0].mxu0
        %v395 = vpop.f32.mrb[0].mxu0
        %v396 = vadd.f32 %v252, %v395
        %v397 = vpop.f32.mrb[0].mxu0
        %398 = vdwg.mxu0
        %v399 = vpack.c.bf16 %v340, %v337
        %v400 = vpack.c.bf16 %v348, %v345
        %v401 = vpack.c.bf16 %v356, %v353
        %v402 = vpack.c.bf16 %v364, %v361
        %v403 = vpack.c.bf16 %v372, %v369
        %v404 = vpack.c.bf16 %v380, %v377
        %v405 = vpack.c.bf16 %v388, %v385
        %v406 = vpack.c.bf16 %v396, %v393
        %v415 = vunpack.c.l.b16 %v399
        %v416 = vunpack.c.h.b16 %v399
        %v417 = vunpack.c.l.b16 %v400
        %v418 = vunpack.c.h.b16 %v400
        %v419 = vunpack.c.l.b16 %v401
        %v420 = vunpack.c.h.b16 %v401
        %v421 = vunpack.c.l.b16 %v402
        %v422 = vunpack.c.h.b16 %v402
        %v423 = vunpack.c.l.b16 %v403
        %v424 = vunpack.c.h.b16 %v403
        %v425 = vunpack.c.l.b16 %v404
        %v426 = vunpack.c.h.b16 %v404
        %v427 = vunpack.c.l.b16 %v405
        %v428 = vunpack.c.h.b16 %v405
        %v429 = vunpack.c.l.b16 %v406
        %v430 = vunpack.c.h.b16 %v406
        %v431 = vpack.c.b16 %v415, %v415
        %v432 = vpack.c.b16 %v416, %v416
        %v433 = vpack.c.b16 %v417, %v417
        %v434 = vpack.c.b16 %v418, %v418
        %v435 = vpack.c.b16 %v419, %v419
        %v436 = vpack.c.b16 %v420, %v420
        %v437 = vpack.c.b16 %v421, %v421
        %v438 = vpack.c.b16 %v422, %v422
        %v439 = vpack.c.b16 %v423, %v423
        %v440 = vpack.c.b16 %v424, %v424
        %v441 = vpack.c.b16 %v425, %v425
        %v442 = vpack.c.b16 %v426, %v426
        %v443 = vpack.c.b16 %v427, %v427
        %v444 = vpack.c.b16 %v428, %v428
        %v445 = vpack.c.b16 %v429, %v429
        %v446 = vpack.c.b16 %v430, %v430
        %463 = vst [vmem:[%s203] sm:$0xf] %v431
        %464 = vst [vmem:[%s203 + $0x4] sm:$0xf] %v432
        %465 = vst [vmem:[%s203 + $0x8] sm:$0xf] %v433
        %466 = vst [vmem:[%s203 + $0xc] sm:$0xf] %v434
        %467 = vst [vmem:[%s203 + $0x10] sm:$0xf] %v435
        %468 = vst [vmem:[%s203 + $0x14] sm:$0xf] %v436
        %469 = vst [vmem:[%s203 + $0x18] sm:$0xf] %v437
        %470 = vst [vmem:[%s203 + $0x1c] sm:$0xf] %v438
        %471 = vst [vmem:[%s203 + $0x20] sm:$0xf] %v439
        %472 = vst [vmem:[%s203 + $0x24] sm:$0xf] %v440
        %473 = vst [vmem:[%s203 + $0x28] sm:$0xf] %v441
        %474 = vst [vmem:[%s203 + $0x2c] sm:$0xf] %v442
        %475 = vst [vmem:[%s203 + $0x30] sm:$0xf] %v443
        %476 = vst [vmem:[%s203 + $0x34] sm:$0xf] %v444
        %477 = vst [vmem:[%s203 + $0x38] sm:$0xf] %v445
        %478 = vst [vmem:[%s203 + $0x3c] sm:$0xf] %v446
        %s479 = sand.u32 %s97, 1
        %s480 = scalar_lea.sflag [#allocation4], %s479
        %s481 = sand.u32 %s97, 1
        %s482 = smul.addr %s481, 64
        %s483 = scalar_lea.vmem [#allocation7], %s482
        // Predicated region
        $region41: #{tpu_custom_call.1} parent=31 // pred_check
          %p484 = pneg %p107
        $region42: #{tpu_custom_call.1} parent=31 // pred_check_branch
          %486 = sbr.rel (%p484) target = $region44
        $region43: #{tpu_custom_call.1} parent=31 // pred_region
          %s487 = smul.u32 16, %s21
          %s489 = ssub.s32 1024, 1024
          %490 = vsyncadd %s480, %s489
          %s491 = smul.addr %s487, 64
          %s492 = scalar_lea.hbm %s3, %s491
          %s493 = sshll.u32 %s483, 4
          %s494 = int_to_ptr.vmem [resolvable:$true] %s493
          %499 = dma.vmem_to_hbm [thread:$0]  %s494, 1024, %s492, %s480, 64, 64, 4
        $region44: #{tpu_custom_call.1} parent=31 // pred_fallthru
          _
      $region32: #{tpu_custom_call.1} parent=5 // pred_fallthru
        _
      %p500 = scmp.le.s32.totalorder 2, %s16
      // Predicated region
      $region45: #{tpu_custom_call.1} parent=5 // pred_check
        %p501 = pneg %p500
      $region46: #{tpu_custom_call.1} parent=5 // pred_check_branch
        %503 = sbr.rel (%p501) target = $region48
      $region47: #{tpu_custom_call.1} parent=5 // pred_region
        %s504 = ssub.s32 %s16, 2
        // Predicated region
        $region49: #{tpu_custom_call.1} parent=47 // pred_check
          %p505 = pneg %p113
        $region50: #{tpu_custom_call.1} parent=47 // pred_check_branch
          %507 = sbr.rel (%p505) target = $region52
        $region51: #{tpu_custom_call.1} parent=47 // pred_region
          %s508 = sand.u32 %s98, 1
          %s509 = scalar_lea.sflag [#allocation4], %s508
          %s510 = sand.u32 %s98, 1
          %s511 = smul.addr %s510, 64
          %s512 = scalar_lea.vmem [#allocation7], %s511
          %513 = dma.done %s509, 1024
        $region52: #{tpu_custom_call.1} parent=47 // pred_fallthru
          _
      $region48: #{tpu_custom_call.1} parent=5 // pred_fallthru
        _
    $region6: #{tpu_custom_call.1} parent=1 // loop_footer
      %s20 = sadd.s32 1, %s16
    $region7: #{tpu_custom_call.1} parent=1 // loop_footer_branch
      %15 = sbr.rel target = $region3
    $region8: #{tpu_custom_call.1} parent=1 // loop_exit
      _
    %514 = vsyncpa [#allocation3], 1
    %s515 = scalar_lea.sflag [#allocation3], 1
    %516 = vsyncpa %s515, 1
    %517 = vsyncpa [#allocation6], 1
    %518 = vsyncpa [#allocation4], 1
    %s519 = scalar_lea.sflag [#allocation4], 1
    %520 = vsyncpa %s519, 1

</llo_original>
